<compile_context>
chip_gen: v7x
topology: tpu7x:2x2x1
jax: 0.10.0
libtpu: 0.0.40
codegen_flags: <defaults>
</compile_context>

<pallas_src>
import functools

import jax
import jax.numpy as jnp
from jax import lax
from jax.experimental import pallas as pl
from jax.experimental.pallas import tpu as pltpu


def _mha_kernel(xq_ref, xkv_ref, wq_ref, wk_ref, wv_ref,
                bq_ref, bk_ref, bv_ref, wp_ref, bp_ref,
                o_ref, acc_ref, *, num_heads, head_dim):
    # xq_ref:  (1, tq, D) bf16   query-row tile of x
    # xkv_ref: (1, S,  D) bf16   full sequence (for K/V)
    # wq/wk/wv_ref: (H, D, hd) bf16 ; bq/bk/bv_ref: (H, 1, hd) f32
    # wp_ref: (H, hd, D) bf16 ; bp_ref: (1, D) f32
    # o_ref: (1, tq, D) ; acc_ref: (tq, D) f32 scratch
    scale = float(head_dim) ** -0.5

    x_q = xq_ref[0]       # (tq, D) bf16
    x_kv = xkv_ref[0]     # (S,  D) bf16

    acc_ref[...] = jnp.zeros_like(acc_ref)

    @pl.loop(0, num_heads)
    def _per_head(h):
        w_q = wq_ref[h]   # (D, hd) bf16
        w_k = wk_ref[h]
        w_v = wv_ref[h]

        # Projections: bf16 MXU inputs, f32 accumulate.  Scale folded into q.
        q = jnp.dot(x_q, w_q, preferred_element_type=jnp.float32) + bq_ref[h]
        q = q * scale                                              # (tq, hd) f32
        k = jnp.dot(x_kv, w_k, preferred_element_type=jnp.float32) + bk_ref[h]
        v = jnp.dot(x_kv, w_v, preferred_element_type=jnp.float32) + bv_ref[h]

        # Attention logits q @ k^T : (tq, S), bf16 operands, f32 accumulate.
        att = lax.dot_general(
            q.astype(jnp.bfloat16), k.astype(jnp.bfloat16),
            dimension_numbers=(((1,), (1,)), ((), ())),
            preferred_element_type=jnp.float32)

        # Numerically-stable softmax, kept in f32 (v5e has no bf16 VPU/EUP).
        att = att - jnp.max(att, axis=-1, keepdims=True)
        p = jnp.exp(att)
        p = p * pl.reciprocal(jnp.sum(p, axis=-1, keepdims=True), approx=True)

        # TODO(synk): attn_drop / proj_drop omitted (identity in eval mode).

        out_h = jnp.dot(p.astype(jnp.bfloat16), v.astype(jnp.bfloat16),
                        preferred_element_type=jnp.float32)        # (tq, hd)

        # Per-head slice of the output projection, accumulated over heads
        # (== permute + flatten + proj of the reference).
        acc_ref[...] += jnp.dot(out_h.astype(jnp.bfloat16), wp_ref[h],
                                preferred_element_type=jnp.float32)  # (tq, D)

    o_ref[0] = (acc_ref[...] + bp_ref[...]).astype(o_ref.dtype)


def multihead_attention(x, w_qkv, b_qkv, w_proj, b_proj, num_heads):
    """x: (B, S, D); w_qkv: (D, 3D); b_qkv: (3D,); w_proj: (D, D); b_proj: (D,).

    Weights are in (in_features, out_features) layout so projections are x @ W + b.
    """
    B, S, D = x.shape
    assert D % num_heads == 0, "dim must be divisible by num_heads"
    hd = D // num_heads

    # Query-row tile: largest "nice" tile that divides S, else whole S.
    tq = S
    for cand in (512, 256, 128):
        if S % cand == 0:
            tq = cand
            break
    nq = S // tq

    # --- head-major, bf16 weight layout (done once in the wrapper) ---
    w3 = w_qkv.reshape(D, 3, num_heads, hd).transpose(1, 2, 0, 3)   # (3, H, D, hd)
    wq_h = w3[0].astype(jnp.bfloat16)
    wk_h = w3[1].astype(jnp.bfloat16)
    wv_h = w3[2].astype(jnp.bfloat16)
    b3 = b_qkv.reshape(3, num_heads, 1, hd).astype(jnp.float32)     # (3, H, 1, hd)
    bq_h, bk_h, bv_h = b3[0], b3[1], b3[2]
    wp_h = w_proj.reshape(num_heads, hd, D).astype(jnp.bfloat16)    # (H, hd, D)
    bp = b_proj.reshape(1, D).astype(jnp.float32)
    x_bf = x.astype(jnp.bfloat16)

    # TODO(synk): for model dims not aligned to 128 lanes, pad D in the wrapper
    # to avoid masked partial stores (irrelevant at this test size).

    kernel = functools.partial(_mha_kernel, num_heads=num_heads, head_dim=hd)

    const = lambda *_: (0, 0, 0)   # weights/biases: constant block index -> DMA'd once

    return pl.pallas_call(
        kernel,
        out_shape=jax.ShapeDtypeStruct((B, S, D), x.dtype),
        grid_spec=pltpu.PrefetchScalarGridSpec(
            num_scalar_prefetch=0,
            grid=(B, nq),
            in_specs=[
                pl.BlockSpec((1, tq, D), lambda b, qi: (b, qi, 0)),   # x (query tile)
                pl.BlockSpec((1, S, D), lambda b, qi: (b, 0, 0)),     # x (full, for K/V)
                pl.BlockSpec((num_heads, D, hd), const),              # w_q per head
                pl.BlockSpec((num_heads, D, hd), const),              # w_k per head
                pl.BlockSpec((num_heads, D, hd), const),              # w_v per head
                pl.BlockSpec((num_heads, 1, hd), const),              # b_q per head
                pl.BlockSpec((num_heads, 1, hd), const),              # b_k per head
                pl.BlockSpec((num_heads, 1, hd), const),              # b_v per head
                pl.BlockSpec((num_heads, hd, D), const),              # w_proj per head
                pl.BlockSpec((1, D), lambda b, qi: (0, 0)),           # b_proj
            ],
            out_specs=pl.BlockSpec((1, tq, D), lambda b, qi: (b, qi, 0)),
            scratch_shapes=[pltpu.VMEM((tq, D), jnp.float32)],
        ),
        compiler_params=pltpu.CompilerParams(
            dimension_semantics=("parallel", "parallel"),
            vmem_limit_bytes=64 * 1024 * 1024,
        ),
    )(x_bf, x_bf, wq_h, wk_h, wv_h, bq_h, bk_h, bv_h, wp_h, bp)


def reference_mha(x, w_qkv, b_qkv, w_proj, b_proj, num_heads):
    """Pure-JAX reference mirroring the PyTorch forward (eval mode), f32."""
    B, S, D = x.shape
    h = D // num_heads
    qkv = x @ w_qkv + b_qkv                                   # (B, S, 3D)
    qkv = qkv.reshape(B, S, 3, num_heads, h).transpose(2, 0, 3, 1, 4)
    q, k, v = qkv[0], qkv[1], qkv[2]                          # (B, H, S, h)
    att = jnp.einsum('bhqd,bhkd->bhqk', q, k) * (h ** -0.5)
    att = jax.nn.softmax(att, axis=-1)
    out = jnp.einsum('bhqk,bhkd->bhqd', att, v)               # (B, H, S, h)
    out = out.transpose(0, 2, 1, 3).reshape(B, S, D)
    return out @ w_proj + b_proj


if __name__ == "__main__":
    B, S, D = 2, 8, 32
    num_heads = 4

    key = jax.random.PRNGKey(0)
    kx, kw1, kb1, kw2, kb2 = jax.random.split(key, 5)

    x = jax.random.normal(kx, (B, S, D), dtype=jnp.float32)

    # nn.Linear(D, 3D) / nn.Linear(D, D), stored as (in_features, out_features).
    w_qkv = jax.random.normal(kw1, (D, 3 * D), dtype=jnp.float32) * 0.05
    b_qkv = jax.random.normal(kb1, (3 * D,), dtype=jnp.float32) * 0.05
    w_proj = jax.random.normal(kw2, (D, D), dtype=jnp.float32) * 0.05
    b_proj = jax.random.normal(kb2, (D,), dtype=jnp.float32) * 0.05

    out = multihead_attention(x, w_qkv, b_qkv, w_proj, b_proj, num_heads)
    out = jax.block_until_ready(out)

    ref = reference_mha(x, w_qkv, b_qkv, w_proj, b_proj, num_heads)
    assert out.shape == (B, S, D)
    max_err = jnp.max(jnp.abs(out - ref))
    assert jnp.allclose(out, ref, atol=2e-2, rtol=2e-2), f"mismatch vs reference (max_err={max_err})"

    print("KERNEL_OK")
</pallas_src>

<mosaic_0001>
module attributes {stable_mosaic.version = 11 : i64} {
  func.func @_mha_kernel(%arg0: i32, %arg1: i32, %arg2: memref<1x8x32xbf16, #tpu.memory_space<vmem>>, %arg3: memref<1x8x32xbf16, #tpu.memory_space<vmem>>, %arg4: memref<4x32x8xbf16, #tpu.memory_space<vmem>>, %arg5: memref<4x32x8xbf16, #tpu.memory_space<vmem>>, %arg6: memref<4x32x8xbf16, #tpu.memory_space<vmem>>, %arg7: memref<4x1x8xf32, #tpu.memory_space<vmem>>, %arg8: memref<4x1x8xf32, #tpu.memory_space<vmem>>, %arg9: memref<4x1x8xf32, #tpu.memory_space<vmem>>, %arg10: memref<4x8x32xbf16, #tpu.memory_space<vmem>>, %arg11: memref<1x32xf32, #tpu.memory_space<vmem>>, %arg12: memref<1x8x32xf32, #tpu.memory_space<vmem>>, %arg13: memref<8x32xf32, #tpu.memory_space<vmem>>) attributes {dimension_semantics = [#tpu.dimension_semantics<parallel>, #tpu.dimension_semantics<parallel>], iteration_bounds = array<i64: 2, 1>, scalar_prefetch = 0 : i64, scratch_operands = 1 : i64, tpu.core_type = #tpu.core_type<tc>, window_params = [{transform_indices = @transform_0, window_bounds = array<i64: 1, 8, 32>}, {transform_indices = @transform_1, window_bounds = array<i64: 1, 8, 32>}, {pipeline_mode = #tpu.pipeline_mode<synchronous>, transform_indices = @transform_2, window_bounds = array<i64: 4, 32, 8>}, {pipeline_mode = #tpu.pipeline_mode<synchronous>, transform_indices = @transform_3, window_bounds = array<i64: 4, 32, 8>}, {pipeline_mode = #tpu.pipeline_mode<synchronous>, transform_indices = @transform_4, window_bounds = array<i64: 4, 32, 8>}, {pipeline_mode = #tpu.pipeline_mode<synchronous>, transform_indices = @transform_5, window_bounds = array<i64: 4, 1, 8>}, {pipeline_mode = #tpu.pipeline_mode<synchronous>, transform_indices = @transform_6, window_bounds = array<i64: 4, 1, 8>}, {pipeline_mode = #tpu.pipeline_mode<synchronous>, transform_indices = @transform_7, window_bounds = array<i64: 4, 1, 8>}, {pipeline_mode = #tpu.pipeline_mode<synchronous>, transform_indices = @transform_8, window_bounds = array<i64: 4, 8, 32>}, {pipeline_mode = #tpu.pipeline_mode<synchronous>, transform_indices = @transform_9, window_bounds = array<i64: 1, 32>}, {transform_indices = @transform_10, window_bounds = array<i64: 1, 8, 32>}]} {
    %c0 = arith.constant 0 : index
    %c0_0 = arith.constant 0 : index
    %c0_1 = arith.constant 0 : index
    %0 = vector.load %arg2[%c0, %c0_0, %c0_1] : memref<1x8x32xbf16, #tpu.memory_space<vmem>>, vector<1x8x32xbf16>
    %1 = vector.shape_cast %0 : vector<1x8x32xbf16> to vector<8x32xbf16>
    %c0_2 = arith.constant 0 : index
    %c0_3 = arith.constant 0 : index
    %c0_4 = arith.constant 0 : index
    %2 = vector.load %arg3[%c0_2, %c0_3, %c0_4] : memref<1x8x32xbf16, #tpu.memory_space<vmem>>, vector<1x8x32xbf16>
    %3 = vector.shape_cast %2 : vector<1x8x32xbf16> to vector<8x32xbf16>
    %cst = arith.constant 0.000000e+00 : f32
    %4 = vector.broadcast %cst : f32 to vector<8x32xf32>
    %c0_5 = arith.constant 0 : index
    %c0_6 = arith.constant 0 : index
    %5 = vector.load %arg13[%c0_5, %c0_6] : memref<8x32xf32, #tpu.memory_space<vmem>>, vector<8x32xf32>
    tpu.vector_store %arg13[%c0_5, %c0_6], %4 {strides = array<i32>} : memref<8x32xf32, #tpu.memory_space<vmem>>, vector<8x32xf32>,
    %c0_i32 = arith.constant 0 : i32
    %c4_i32 = arith.constant 4 : i32
    %6 = arith.addi %c0_i32, %c4_i32 : i32
    %c1_i32 = arith.constant 1 : i32
    scf.for %arg14 = %c0_i32 to %6 step %c1_i32  : i32 {
      %c1_i32_15 = arith.constant 1 : i32
      %14 = arith.muli %arg14, %c1_i32_15 : i32
      %c0_i32_16 = arith.constant 0 : i32
      %15 = arith.addi %c0_i32_16, %14 : i32
      %16 = arith.index_cast %15 : i32 to index
      %c0_17 = arith.constant 0 : index
      %c0_18 = arith.constant 0 : index
      %17 = vector.load %arg4[%16, %c0_17, %c0_18] : memref<4x32x8xbf16, #tpu.memory_space<vmem>>, vector<1x32x8xbf16>
      %18 = vector.shape_cast %17 : vector<1x32x8xbf16> to vector<32x8xbf16>
      %19 = arith.index_cast %15 : i32 to index
      %c0_19 = arith.constant 0 : index
      %c0_20 = arith.constant 0 : index
      %20 = vector.load %arg5[%19, %c0_19, %c0_20] : memref<4x32x8xbf16, #tpu.memory_space<vmem>>, vector<1x32x8xbf16>
      %21 = vector.shape_cast %20 : vector<1x32x8xbf16> to vector<32x8xbf16>
      %22 = arith.index_cast %15 : i32 to index
      %c0_21 = arith.constant 0 : index
      %c0_22 = arith.constant 0 : index
      %23 = vector.load %arg6[%22, %c0_21, %c0_22] : memref<4x32x8xbf16, #tpu.memory_space<vmem>>, vector<1x32x8xbf16>
      %24 = vector.shape_cast %23 : vector<1x32x8xbf16> to vector<32x8xbf16>
      %cst_23 = arith.constant dense<0.000000e+00> : vector<8x8xf32>
      %25 = tpu.matmul %1, %18, %cst_23 {dimension_numbers = #tpu.dot_dimension_numbers<[1], [0], [0], [1], [0, 0, 1, 1], [], []>} : vector<8x32xbf16>, vector<32x8xbf16>, vector<8x8xf32> -> vector<8x8xf32>
      %26 = arith.index_cast %15 : i32 to index
      %c0_24 = arith.constant 0 : index
      %c0_25 = arith.constant 0 : index
      %27 = vector.load %arg7[%26, %c0_24, %c0_25] : memref<4x1x8xf32, #tpu.memory_space<vmem>>, vector<1x1x8xf32>
      %28 = vector.shape_cast %27 : vector<1x1x8xf32> to vector<1x8xf32>
      %29 = vector.broadcast %28 : vector<1x8xf32> to vector<8x8xf32>
      %30 = arith.addf %25, %29 : vector<8x8xf32>
      %cst_26 = arith.constant 0.353553385 : f32
      %31 = vector.broadcast %cst_26 : f32 to vector<8x8xf32>
      %32 = arith.mulf %30, %31 : vector<8x8xf32>
      %cst_27 = arith.constant dense<0.000000e+00> : vector<8x8xf32>
      %33 = tpu.matmul %3, %21, %cst_27 {dimension_numbers = #tpu.dot_dimension_numbers<[1], [0], [0], [1], [0, 0, 1, 1], [], []>} : vector<8x32xbf16>, vector<32x8xbf16>, vector<8x8xf32> -> vector<8x8xf32>
      %34 = arith.index_cast %15 : i32 to index
      %c0_28 = arith.constant 0 : index
      %c0_29 = arith.constant 0 : index
      %35 = vector.load %arg8[%34, %c0_28, %c0_29] : memref<4x1x8xf32, #tpu.memory_space<vmem>>, vector<1x1x8xf32>
      %36 = vector.shape_cast %35 : vector<1x1x8xf32> to vector<1x8xf32>
      %37 = vector.broadcast %36 : vector<1x8xf32> to vector<8x8xf32>
      %38 = arith.addf %33, %37 : vector<8x8xf32>
      %cst_30 = arith.constant dense<0.000000e+00> : vector<8x8xf32>
      %39 = tpu.matmul %3, %24, %cst_30 {dimension_numbers = #tpu.dot_dimension_numbers<[1], [0], [0], [1], [0, 0, 1, 1], [], []>} : vector<8x32xbf16>, vector<32x8xbf16>, vector<8x8xf32> -> vector<8x8xf32>
      %40 = arith.index_cast %15 : i32 to index
      %c0_31 = arith.constant 0 : index
      %c0_32 = arith.constant 0 : index
      %41 = vector.load %arg9[%40, %c0_31, %c0_32] : memref<4x1x8xf32, #tpu.memory_space<vmem>>, vector<1x1x8xf32>
      %42 = vector.shape_cast %41 : vector<1x1x8xf32> to vector<1x8xf32>
      %43 = vector.broadcast %42 : vector<1x8xf32> to vector<8x8xf32>
      %44 = arith.addf %39, %43 : vector<8x8xf32>
      %45 = arith.truncf %32 : vector<8x8xf32> to vector<8x8xbf16>
      %46 = arith.truncf %38 : vector<8x8xf32> to vector<8x8xbf16>
      %cst_33 = arith.constant dense<0.000000e+00> : vector<8x8xf32>
      %47 = tpu.matmul %45, %46, %cst_33 {dimension_numbers = #tpu.dot_dimension_numbers<[1], [1], [0], [0], [0, 0, 1, 0], [], []>} : vector<8x8xbf16>, vector<8x8xbf16>, vector<8x8xf32> -> vector<8x8xf32>
      %cst_34 = arith.constant dense<0xFF800000> : vector<8xf32>
      %48 = vector.multi_reduction <maximumf>, %47, %cst_34 [1] : vector<8x8xf32> to vector<8xf32>
      %49 = vector.shape_cast %48 : vector<8xf32> to vector<8x1xf32>
      %50 = vector.broadcast %49 : vector<8x1xf32> to vector<8x8xf32>
      %51 = arith.subf %47, %50 : vector<8x8xf32>
      %52 = math.exp %51 : vector<8x8xf32>
      %cst_35 = arith.constant dense<0.000000e+00> : vector<8xf32>
      %53 = vector.multi_reduction <add>, %52, %cst_35 [1] : vector<8x8xf32> to vector<8xf32>
      %54 = vector.shape_cast %53 : vector<8xf32> to vector<8x1xf32>
      %55 = tpu.reciprocal %54 {approx = true} : vector<8x1xf32> -> vector<8x1xf32>
      %56 = vector.broadcast %55 : vector<8x1xf32> to vector<8x8xf32>
      %57 = arith.mulf %52, %56 : vector<8x8xf32>
      %58 = arith.truncf %57 : vector<8x8xf32> to vector<8x8xbf16>
      %59 = arith.truncf %44 : vector<8x8xf32> to vector<8x8xbf16>
      %cst_36 = arith.constant dense<0.000000e+00> : vector<8x8xf32>
      %60 = tpu.matmul %58, %59, %cst_36 {dimension_numbers = #tpu.dot_dimension_numbers<[1], [0], [0], [1], [0, 0, 1, 1], [], []>} : vector<8x8xbf16>, vector<8x8xbf16>, vector<8x8xf32> -> vector<8x8xf32>
      %c0_37 = arith.constant 0 : index
      %c0_38 = arith.constant 0 : index
      %61 = vector.load %arg13[%c0_37, %c0_38] : memref<8x32xf32, #tpu.memory_space<vmem>>, vector<8x32xf32>
      %62 = arith.truncf %60 : vector<8x8xf32> to vector<8x8xbf16>
      %63 = arith.index_cast %15 : i32 to index
      %c0_39 = arith.constant 0 : index
      %c0_40 = arith.constant 0 : index
      %64 = vector.load %arg10[%63, %c0_39, %c0_40] : memref<4x8x32xbf16, #tpu.memory_space<vmem>>, vector<1x8x32xbf16>
      %65 = vector.shape_cast %64 : vector<1x8x32xbf16> to vector<8x32xbf16>
      %cst_41 = arith.constant dense<0.000000e+00> : vector<8x32xf32>
      %66 = tpu.matmul %62, %65, %cst_41 {dimension_numbers = #tpu.dot_dimension_numbers<[1], [0], [0], [1], [0, 0, 1, 1], [], []>} : vector<8x8xbf16>, vector<8x32xbf16>, vector<8x32xf32> -> vector<8x32xf32>
      %67 = arith.addf %61, %66 : vector<8x32xf32>
      %c0_42 = arith.constant 0 : index
      %c0_43 = arith.constant 0 : index
      %68 = vector.load %arg13[%c0_42, %c0_43] : memref<8x32xf32, #tpu.memory_space<vmem>>, vector<8x32xf32>
      tpu.vector_store %arg13[%c0_42, %c0_43], %67 {strides = array<i32>} : memref<8x32xf32, #tpu.memory_space<vmem>>, vector<8x32xf32>,
    }
    %c4_i32_7 = arith.constant 4 : i32
    %c0_8 = arith.constant 0 : index
    %c0_9 = arith.constant 0 : index
    %7 = vector.load %arg13[%c0_8, %c0_9] : memref<8x32xf32, #tpu.memory_space<vmem>>, vector<8x32xf32>
    %c0_10 = arith.constant 0 : index
    %c0_11 = arith.constant 0 : index
    %8 = vector.load %arg11[%c0_10, %c0_11] : memref<1x32xf32, #tpu.memory_space<vmem>>, vector<1x32xf32>
    %9 = vector.broadcast %8 : vector<1x32xf32> to vector<8x32xf32>
    %10 = arith.addf %7, %9 : vector<8x32xf32>
    %c0_12 = arith.constant 0 : index
    %c0_13 = arith.constant 0 : index
    %c0_14 = arith.constant 0 : index
    %11 = vector.load %arg12[%c0_12, %c0_13, %c0_14] : memref<1x8x32xf32, #tpu.memory_space<vmem>>, vector<1x8x32xf32>
    %12 = vector.shape_cast %11 : vector<1x8x32xf32> to vector<8x32xf32>
    %13 = vector.shape_cast %10 : vector<8x32xf32> to vector<1x8x32xf32>
    tpu.vector_store %arg12[%c0_12, %c0_13, %c0_14], %13 {strides = array<i32>} : memref<1x8x32xf32, #tpu.memory_space<vmem>>, vector<1x8x32xf32>,
    return
  }
  func.func @transform_0(%arg0: i32, %arg1: i32) -> (i32, i32, i32) {
    %c0_i32 = arith.constant 0 : i32
    %c0_i32_0 = arith.constant 0 : i32
    return %arg0, %arg1, %c0_i32 : i32, i32, i32
  }
  func.func @transform_1(%arg0: i32, %arg1: i32) -> (i32, i32, i32) {
    %c0_i32 = arith.constant 0 : i32
    %c0_i32_0 = arith.constant 0 : i32
    %c0_i32_1 = arith.constant 0 : i32
    return %arg0, %c0_i32, %c0_i32_0 : i32, i32, i32
  }
  func.func @transform_2(%arg0: i32, %arg1: i32) -> (i32, i32, i32) {
    %c0_i32 = arith.constant 0 : i32
    %c0_i32_0 = arith.constant 0 : i32
    %c0_i32_1 = arith.constant 0 : i32
    %c0_i32_2 = arith.constant 0 : i32
    return %c0_i32, %c0_i32_0, %c0_i32_1 : i32, i32, i32
  }
  func.func @transform_3(%arg0: i32, %arg1: i32) -> (i32, i32, i32) {
    %c0_i32 = arith.constant 0 : i32
    %c0_i32_0 = arith.constant 0 : i32
    %c0_i32_1 = arith.constant 0 : i32
    %c0_i32_2 = arith.constant 0 : i32
    return %c0_i32, %c0_i32_0, %c0_i32_1 : i32, i32, i32
  }
  func.func @transform_4(%arg0: i32, %arg1: i32) -> (i32, i32, i32) {
    %c0_i32 = arith.constant 0 : i32
    %c0_i32_0 = arith.constant 0 : i32
    %c0_i32_1 = arith.constant 0 : i32
    %c0_i32_2 = arith.constant 0 : i32
    return %c0_i32, %c0_i32_0, %c0_i32_1 : i32, i32, i32
  }
  func.func @transform_5(%arg0: i32, %arg1: i32) -> (i32, i32, i32) {
    %c0_i32 = arith.constant 0 : i32
    %c0_i32_0 = arith.constant 0 : i32
    %c0_i32_1 = arith.constant 0 : i32
    %c0_i32_2 = arith.constant 0 : i32
    return %c0_i32, %c0_i32_0, %c0_i32_1 : i32, i32, i32
  }
  func.func @transform_6(%arg0: i32, %arg1: i32) -> (i32, i32, i32) {
    %c0_i32 = arith.constant 0 : i32
    %c0_i32_0 = arith.constant 0 : i32
    %c0_i32_1 = arith.constant 0 : i32
    %c0_i32_2 = arith.constant 0 : i32
    return %c0_i32, %c0_i32_0, %c0_i32_1 : i32, i32, i32
  }
  func.func @transform_7(%arg0: i32, %arg1: i32) -> (i32, i32, i32) {
    %c0_i32 = arith.constant 0 : i32
    %c0_i32_0 = arith.constant 0 : i32
    %c0_i32_1 = arith.constant 0 : i32
    %c0_i32_2 = arith.constant 0 : i32
    return %c0_i32, %c0_i32_0, %c0_i32_1 : i32, i32, i32
  }
  func.func @transform_8(%arg0: i32, %arg1: i32) -> (i32, i32, i32) {
    %c0_i32 = arith.constant 0 : i32
    %c0_i32_0 = arith.constant 0 : i32
    %c0_i32_1 = arith.constant 0 : i32
    %c0_i32_2 = arith.constant 0 : i32
    return %c0_i32, %c0_i32_0, %c0_i32_1 : i32, i32, i32
  }
  func.func @transform_9(%arg0: i32, %arg1: i32) -> (i32, i32) {
    %c0_i32 = arith.constant 0 : i32
    %c0_i32_0 = arith.constant 0 : i32
    %c0_i32_1 = arith.constant 0 : i32
    return %c0_i32, %c0_i32_0 : i32, i32
  }
  func.func @transform_10(%arg0: i32, %arg1: i32) -> (i32, i32, i32) {
    %c0_i32 = arith.constant 0 : i32
    %c0_i32_0 = arith.constant 0 : i32
    return %arg0, %arg1, %c0_i32 : i32, i32, i32
  }
}

</mosaic_0001>

<llo_original>
// kernel: tpu_custom_call.1
$region0: #{tpu_custom_call.1}
  #allocation0 [shape = 'u32[]', space=smem, size = 0x4, offset = 0x4, fixed_abs, tag = 'smem constant byte address 0x4 - core index']
  #allocation1 [shape = 'u32[144,128]{1,0:T(1,128)}', space=vmem, size = 0x12000, scoped, tag = 'internal scratch']
  #allocation2 [shape = 'f32[8,32]{1,0:T(8,128)}', space=vmem, size = 0x1000, scoped, tag = 'scratch operand']
  %s0 = inlined_call_operand.hbm [shape: bf16[2,8,32], index: 0, kind: input, shape index: {}]
  %s1 = inlined_call_operand.hbm [shape: bf16[2,8,32], index: 1, kind: input, shape index: {}]
  %s2 = inlined_call_operand.hbm [shape: bf16[4,32,8], index: 2, kind: input, shape index: {}]
  %s3 = inlined_call_operand.hbm [shape: bf16[4,32,8], index: 3, kind: input, shape index: {}]
  %s4 = inlined_call_operand.hbm [shape: bf16[4,32,8], index: 4, kind: input, shape index: {}]
  %s5 = inlined_call_operand.hbm [shape: f32[4,1,8], index: 5, kind: input, shape index: {}]
  %s6 = inlined_call_operand.hbm [shape: f32[4,1,8], index: 6, kind: input, shape index: {}]
  %s7 = inlined_call_operand.hbm [shape: f32[4,1,8], index: 7, kind: input, shape index: {}]
  %s8 = inlined_call_operand.hbm [shape: bf16[4,8,32], index: 8, kind: input, shape index: {}]
  %s9 = inlined_call_operand.hbm [shape: f32[1,32], index: 9, kind: input, shape index: {}]
  %s10 = inlined_call_operand.hbm [shape: f32[2,8,32], index: 10, kind: output, shape index: {}]
  %s11 = sld [smem:[#allocation0]]
  $region120: #{tpu_custom_call.1} parent=0
    _
  %s13 = ssub.s32 1, %s11
  %s14 = scalar_select 0, %s13, %s11
  $region1: #{tpu_custom_call.1} parent=0
    #allocation3 [shape = 'u8[4096]{0}', space=vmem, size = 0x1000, scoped, tag = 'input window, operand 0']
    #allocation4 [shape = 's32[2]{0}', space=sflag, size = 0x8, scoped, tag = 'scoped memory for tpu_custom_call.1']
    #allocation5 [shape = 's32[2]{0}', space=sflag, size = 0x8, scoped, tag = 'scoped memory for tpu_custom_call.1']
    #allocation6 [shape = 'u8[4096]{0}', space=vmem, size = 0x1000, scoped, tag = 'input window, operand 1']
    #allocation7 [shape = 's32[2]{0}', space=sflag, size = 0x8, scoped, tag = 'scoped memory for tpu_custom_call.1']
    #allocation8 [shape = 'u8[32768]{0}', space=vmem, size = 0x8000, scoped, tag = 'input window, operand 2, single buffered']
    #allocation9 [shape = 'u8[32768]{0}', space=vmem, size = 0x8000, scoped, tag = 'input window, operand 3, single buffered']
    #allocation10 [shape = 's32[1]{0}', space=sflag, size = 0x4, scoped, tag = 'scoped memory for tpu_custom_call.1']
    #allocation11 [shape = 'u8[32768]{0}', space=vmem, size = 0x8000, scoped, tag = 'input window, operand 4, single buffered']
    #allocation12 [shape = 'u8[2048]{0}', space=vmem, size = 0x800, scoped, tag = 'input window, operand 5, single buffered']
    #allocation13 [shape = 's32[1]{0}', space=sflag, size = 0x4, scoped, tag = 'scoped memory for tpu_custom_call.1']
    #allocation14 [shape = 'u8[2048]{0}', space=vmem, size = 0x800, scoped, tag = 'input window, operand 6, single buffered']
    #allocation15 [shape = 'u8[2048]{0}', space=vmem, size = 0x800, scoped, tag = 'input window, operand 7, single buffered']
    #allocation16 [shape = 's32[1]{0}', space=sflag, size = 0x4, scoped, tag = 'scoped memory for tpu_custom_call.1']
    #allocation17 [shape = 'u8[8192]{0}', space=vmem, size = 0x2000, scoped, tag = 'input window, operand 8, single buffered']
    #allocation18 [shape = 'u8[512]{0}', space=vmem, size = 0x400, scoped, tag = 'input window, operand 9, single buffered']
    #allocation19 [shape = 's32[1]{0}', space=sflag, size = 0x4, scoped, tag = 'scoped memory for tpu_custom_call.1']
    #allocation20 [shape = 'u8[8192]{0}', space=vmem, size = 0x2000, scoped, tag = 'output window, operand 0']
    %15 = vsyncpa [#allocation4], 0
    %s16 = scalar_lea.sflag [#allocation4], 1
    %17 = vsyncpa %s16, 0
    %18 = vsyncpa [#allocation7], 0
    %s19 = scalar_lea.sflag [#allocation7], 1
    %20 = vsyncpa %s19, 0
    %21 = vsyncpa [#allocation10], 0
    %22 = vsyncpa [#allocation13], 0
    %23 = vsyncpa [#allocation16], 0
    %24 = vsyncpa [#allocation19], 0
    %25 = vsyncpa [#allocation5], 0
    %s26 = scalar_lea.sflag [#allocation5], 1
    %27 = vsyncpa %s26, 0
    loop: start=0, step=1, limit=4
    $region2: #{tpu_custom_call.1} parent=1 // loop_pre_header
      _
    $region3: #{tpu_custom_call.1} parent=1 // loop_header
      %s29 = sphi 0, %s33
      %p30 = scmp.ge.s32.totalorder %s29, 4
      %s36 = sphi 0, %s48
      %s37 = sphi 0, %s44
      %s38 = sphi 0, %s36
      %s39 = sphi 0, %s37
      %s40 = sphi 0, %s38
      %s41 = sphi 0, %s39
      %s53 = sphi 0, %s55
      %s56 = sphi 0, %s53
      %s57 = sphi 0, %s56
      %s73 = sphi 0, %s57
      %s79 = sphi 0, %s81
      %s82 = sphi 0, %s79
      %s83 = sphi 0, %s82
      %s99 = sphi 0, %s83
      %s103 = sphi 0, %s103
      %s105 = sphi 0, %s103
      %s106 = sphi 0, %s105
      %s120 = sphi 0, %s106
      %s124 = sphi 0, %s124
      %s126 = sphi 0, %s124
      %s127 = sphi 0, %s126
      %s141 = sphi 0, %s127
      %s145 = sphi 0, %s145
      %s147 = sphi 0, %s145
      %s148 = sphi 0, %s147
      %s162 = sphi 0, %s148
      %s166 = sphi 0, %s166
      %s168 = sphi 0, %s166
      %s169 = sphi 0, %s168
      %s183 = sphi 0, %s169
      %s187 = sphi 0, %s187
      %s189 = sphi 0, %s187
      %s190 = sphi 0, %s189
      %s204 = sphi 0, %s190
      %s208 = sphi 0, %s208
      %s210 = sphi 0, %s208
      %s211 = sphi 0, %s210
      %s225 = sphi 0, %s211
      %s229 = sphi 0, %s229
      %s231 = sphi 0, %s229
      %s232 = sphi 0, %s231
      %s246 = sphi 0, %s232
      %s250 = sphi 0, %s250
      %s252 = sphi 0, %s250
      %s253 = sphi 0, %s252
      %s267 = sphi 0, %s253
      %s275 = sphi 0, %s277
      %s278 = sphi 0, %s275
      %s279 = sphi 0, %s278
      %s295 = sphi 0, %s279
    $region4: #{tpu_custom_call.1} parent=1 // loop_header_branch
      %32 = sbr.rel (%p30) target = $region8
    $region5: #{tpu_custom_call.1} parent=1 // loop_body
      %s34 = ssub.s32 %s29, 1
      %s35 = ssub.s32 %s29, 2
      %s42 = sadd.s32 1, %s37
      %p43 = scmp.ge.s32.totalorder %s42, 1
      %s44 = scalar_select %p43, 0, %s42
      %s45 = sadd.s32 1, %s36
      %s46 = scalar_select %p43, %s45, %s36
      %p47 = scmp.ge.s32.totalorder %s46, 2
      %s48 = scalar_select %p47, 0, %s46
      %s49 = ssub.s32 %s36, %s48
      %s50 = ssub.s32 %s37, %s44
      %s51 = sor.u32 %s49, %s50
      %p52 = scmp.eq.s32.totalorder %s51, 0
      %s54 = sadd.s32 %s53, 1
      %s55 = scalar_select %p52, %s53, %s54
      %p58 = pneg %p52
      %p59 = scmp.eq.s32.totalorder %s29, 1
      %p60 = por %p58, %p59
      %p61 = scmp.ne.s32.totalorder %s53, %s56
      %p62 = scmp.eq.s32.totalorder %s29, 0
      %p63 = por %p61, %p62
      %p64 = scmp.ne.s32.totalorder %s53, %s56
      %p65 = scmp.eq.s32.totalorder %s34, 1
      %p66 = por %p64, %p65
      %p67 = scmp.ne.s32.totalorder %s56, %s57
      %p68 = scmp.eq.s32.totalorder %s34, 0
      %p69 = por %p67, %p68
      %p70 = scmp.ne.s32.totalorder %s56, %s57
      %p71 = scmp.eq.s32.totalorder %s35, 1
      %p72 = por %p70, %p71
      %p74 = scmp.ne.s32.totalorder %s57, %s73
      %p75 = scmp.eq.s32.totalorder %s35, 0
      %p76 = por %p74, %p75
      %s77 = ssub.s32 %s36, %s48
      %p78 = scmp.eq.s32.totalorder %s77, 0
      %s80 = sadd.s32 %s79, 1
      %s81 = scalar_select %p78, %s79, %s80
      %p84 = pneg %p78
      %p85 = scmp.eq.s32.totalorder %s29, 1
      %p86 = por %p84, %p85
      %p87 = scmp.ne.s32.totalorder %s79, %s82
      %p88 = scmp.eq.s32.totalorder %s29, 0
      %p89 = por %p87, %p88
      %p90 = scmp.ne.s32.totalorder %s79, %s82
      %p91 = scmp.eq.s32.totalorder %s34, 1
      %p92 = por %p90, %p91
      %p93 = scmp.ne.s32.totalorder %s82, %s83
      %p94 = scmp.eq.s32.totalorder %s34, 0
      %p95 = por %p93, %p94
      %p96 = scmp.ne.s32.totalorder %s82, %s83
      %p97 = scmp.eq.s32.totalorder %s35, 1
      %p98 = por %p96, %p97
      %p100 = scmp.ne.s32.totalorder %s83, %s99
      %p101 = scmp.eq.s32.totalorder %s35, 0
      %p102 = por %p100, %p101
      %s104 = sadd.s32 %s103, 1
      %p107 = scmp.eq.s32.totalorder %s29, 1
      %p108 = scmp.ne.s32.totalorder %s103, %s105
      %p109 = scmp.eq.s32.totalorder %s29, 0
      %p110 = por %p108, %p109
      %p111 = scmp.ne.s32.totalorder %s103, %s105
      %p112 = scmp.eq.s32.totalorder %s34, 1
      %p113 = por %p111, %p112
      %p114 = scmp.ne.s32.totalorder %s105, %s106
      %p115 = scmp.eq.s32.totalorder %s34, 0
      %p116 = por %p114, %p115
      %p117 = scmp.ne.s32.totalorder %s105, %s106
      %p118 = scmp.eq.s32.totalorder %s35, 1
      %p119 = por %p117, %p118
      %p121 = scmp.ne.s32.totalorder %s106, %s120
      %p122 = scmp.eq.s32.totalorder %s35, 0
      %p123 = por %p121, %p122
      %s125 = sadd.s32 %s124, 1
      %p128 = scmp.eq.s32.totalorder %s29, 1
      %p129 = scmp.ne.s32.totalorder %s124, %s126
      %p130 = scmp.eq.s32.totalorder %s29, 0
      %p131 = por %p129, %p130
      %p132 = scmp.ne.s32.totalorder %s124, %s126
      %p133 = scmp.eq.s32.totalorder %s34, 1
      %p134 = por %p132, %p133
      %p135 = scmp.ne.s32.totalorder %s126, %s127
      %p136 = scmp.eq.s32.totalorder %s34, 0
      %p137 = por %p135, %p136
      %p138 = scmp.ne.s32.totalorder %s126, %s127
      %p139 = scmp.eq.s32.totalorder %s35, 1
      %p140 = por %p138, %p139
      %p142 = scmp.ne.s32.totalorder %s127, %s141
      %p143 = scmp.eq.s32.totalorder %s35, 0
      %p144 = por %p142, %p143
      %s146 = sadd.s32 %s145, 1
      %p149 = scmp.eq.s32.totalorder %s29, 1
      %p150 = scmp.ne.s32.totalorder %s145, %s147
      %p151 = scmp.eq.s32.totalorder %s29, 0
      %p152 = por %p150, %p151
      %p153 = scmp.ne.s32.totalorder %s145, %s147
      %p154 = scmp.eq.s32.totalorder %s34, 1
      %p155 = por %p153, %p154
      %p156 = scmp.ne.s32.totalorder %s147, %s148
      %p157 = scmp.eq.s32.totalorder %s34, 0
      %p158 = por %p156, %p157
      %p159 = scmp.ne.s32.totalorder %s147, %s148
      %p160 = scmp.eq.s32.totalorder %s35, 1
      %p161 = por %p159, %p160
      %p163 = scmp.ne.s32.totalorder %s148, %s162
      %p164 = scmp.eq.s32.totalorder %s35, 0
      %p165 = por %p163, %p164
      %s167 = sadd.s32 %s166, 1
      %p170 = scmp.eq.s32.totalorder %s29, 1
      %p171 = scmp.ne.s32.totalorder %s166, %s168
      %p172 = scmp.eq.s32.totalorder %s29, 0
      %p173 = por %p171, %p172
      %p174 = scmp.ne.s32.totalorder %s166, %s168
      %p175 = scmp.eq.s32.totalorder %s34, 1
      %p176 = por %p174, %p175
      %p177 = scmp.ne.s32.totalorder %s168, %s169
      %p178 = scmp.eq.s32.totalorder %s34, 0
      %p179 = por %p177, %p178
      %p180 = scmp.ne.s32.totalorder %s168, %s169
      %p181 = scmp.eq.s32.totalorder %s35, 1
      %p182 = por %p180, %p181
      %p184 = scmp.ne.s32.totalorder %s169, %s183
      %p185 = scmp.eq.s32.totalorder %s35, 0
      %p186 = por %p184, %p185
      %s188 = sadd.s32 %s187, 1
      %p191 = scmp.eq.s32.totalorder %s29, 1
      %p192 = scmp.ne.s32.totalorder %s187, %s189
      %p193 = scmp.eq.s32.totalorder %s29, 0
      %p194 = por %p192, %p193
      %p195 = scmp.ne.s32.totalorder %s187, %s189
      %p196 = scmp.eq.s32.totalorder %s34, 1
      %p197 = por %p195, %p196
      %p198 = scmp.ne.s32.totalorder %s189, %s190
      %p199 = scmp.eq.s32.totalorder %s34, 0
      %p200 = por %p198, %p199
      %p201 = scmp.ne.s32.totalorder %s189, %s190
      %p202 = scmp.eq.s32.totalorder %s35, 1
      %p203 = por %p201, %p202
      %p205 = scmp.ne.s32.totalorder %s190, %s204
      %p206 = scmp.eq.s32.totalorder %s35, 0
      %p207 = por %p205, %p206
      %s209 = sadd.s32 %s208, 1
      %p212 = scmp.eq.s32.totalorder %s29, 1
      %p213 = scmp.ne.s32.totalorder %s208, %s210
      %p214 = scmp.eq.s32.totalorder %s29, 0
      %p215 = por %p213, %p214
      %p216 = scmp.ne.s32.totalorder %s208, %s210
      %p217 = scmp.eq.s32.totalorder %s34, 1
      %p218 = por %p216, %p217
      %p219 = scmp.ne.s32.totalorder %s210, %s211
      %p220 = scmp.eq.s32.totalorder %s34, 0
      %p221 = por %p219, %p220
      %p222 = scmp.ne.s32.totalorder %s210, %s211
      %p223 = scmp.eq.s32.totalorder %s35, 1
      %p224 = por %p222, %p223
      %p226 = scmp.ne.s32.totalorder %s211, %s225
      %p227 = scmp.eq.s32.totalorder %s35, 0
      %p228 = por %p226, %p227
      %s230 = sadd.s32 %s229, 1
      %p233 = scmp.eq.s32.totalorder %s29, 1
      %p234 = scmp.ne.s32.totalorder %s229, %s231
      %p235 = scmp.eq.s32.totalorder %s29, 0
      %p236 = por %p234, %p235
      %p237 = scmp.ne.s32.totalorder %s229, %s231
      %p238 = scmp.eq.s32.totalorder %s34, 1
      %p239 = por %p237, %p238
      %p240 = scmp.ne.s32.totalorder %s231, %s232
      %p241 = scmp.eq.s32.totalorder %s34, 0
      %p242 = por %p240, %p241
      %p243 = scmp.ne.s32.totalorder %s231, %s232
      %p244 = scmp.eq.s32.totalorder %s35, 1
      %p245 = por %p243, %p244
      %p247 = scmp.ne.s32.totalorder %s232, %s246
      %p248 = scmp.eq.s32.totalorder %s35, 0
      %p249 = por %p247, %p248
      %s251 = sadd.s32 %s250, 1
      %p254 = scmp.eq.s32.totalorder %s29, 1
      %p255 = scmp.ne.s32.totalorder %s250, %s252
      %p256 = scmp.eq.s32.totalorder %s29, 0
      %p257 = por %p255, %p256
      %p258 = scmp.ne.s32.totalorder %s250, %s252
      %p259 = scmp.eq.s32.totalorder %s34, 1
      %p260 = por %p258, %p259
      %p261 = scmp.ne.s32.totalorder %s252, %s253
      %p262 = scmp.eq.s32.totalorder %s34, 0
      %p263 = por %p261, %p262
      %p264 = scmp.ne.s32.totalorder %s252, %s253
      %p265 = scmp.eq.s32.totalorder %s35, 1
      %p266 = por %p264, %p265
      %p268 = scmp.ne.s32.totalorder %s253, %s267
      %p269 = scmp.eq.s32.totalorder %s35, 0
      %p270 = por %p268, %p269
      %s271 = ssub.s32 %s36, %s48
      %s272 = ssub.s32 %s37, %s44
      %s273 = sor.u32 %s271, %s272
      %p274 = scmp.eq.s32.totalorder %s273, 0
      %s276 = sadd.s32 %s275, 1
      %s277 = scalar_select %p274, %s275, %s276
      %p280 = pneg %p274
      %p281 = scmp.eq.s32.totalorder %s29, 1
      %p282 = por %p280, %p281
      %p283 = scmp.ne.s32.totalorder %s275, %s278
      %p284 = scmp.eq.s32.totalorder %s29, 0
      %p285 = por %p283, %p284
      %p286 = scmp.ne.s32.totalorder %s275, %s278
      %p287 = scmp.eq.s32.totalorder %s34, 1
      %p288 = por %p286, %p287
      %p289 = scmp.ne.s32.totalorder %s278, %s279
      %p290 = scmp.eq.s32.totalorder %s34, 0
      %p291 = por %p289, %p290
      %p292 = scmp.ne.s32.totalorder %s278, %s279
      %p293 = scmp.eq.s32.totalorder %s35, 1
      %p294 = por %p292, %p293
      %p296 = scmp.ne.s32.totalorder %s279, %s295
      %p297 = scmp.eq.s32.totalorder %s35, 0
      %p298 = por %p296, %p297
      %p299 = scmp.le.s32.totalorder 1, %s29
      %p300 = scmp.lt.s32.totalorder %s29, 3
      %p301 = pnand %p299, %p300
      %p302 = pneg %p301
      // Predicated region
      $region9: #{tpu_custom_call.1} parent=5 // pred_check
        _
      $region10: #{tpu_custom_call.1} parent=5 // pred_check_branch
        %304 = sbr.rel (%p301) target = $region12
      $region11: #{tpu_custom_call.1} parent=5 // pred_region
        %s305 = ssub.s32 %s29, 1
        // Predicated region
        $region13: #{tpu_custom_call.1} parent=11 // pred_check
          %p306 = pneg %p116
        $region14: #{tpu_custom_call.1} parent=11 // pred_check_branch
          %308 = sbr.rel (%p306) target = $region16
        $region15: #{tpu_custom_call.1} parent=11 // pred_region
          %s310 = ssub.s32 1024, 1024
          %311 = vsyncadd [#allocation7], %s310
          %s312 = sshll.u32 [#allocation8], 4
          %s313 = int_to_ptr.vmem [resolvable:$true] %s312
          %318 = dma.hbm_to_vmem [thread:$0]  %s2, 1024, %s313, [#allocation7], 64, 64, 4
        $region16: #{tpu_custom_call.1} parent=11 // pred_fallthru
          _
        // Predicated region
        $region17: #{tpu_custom_call.1} parent=11 // pred_check
          %p319 = pneg %p137
        $region18: #{tpu_custom_call.1} parent=11 // pred_check_branch
          %321 = sbr.rel (%p319) target = $region20
        $region19: #{tpu_custom_call.1} parent=11 // pred_region
          %s323 = ssub.s32 1024, 1024
          %324 = vsyncadd [#allocation10], %s323
          %s325 = sshll.u32 [#allocation9], 4
          %s326 = int_to_ptr.vmem [resolvable:$true] %s325
          %331 = dma.hbm_to_vmem [thread:$0]  %s3, 1024, %s326, [#allocation10], 64, 64, 4
        $region20: #{tpu_custom_call.1} parent=11 // pred_fallthru
          _
        // Predicated region
        $region21: #{tpu_custom_call.1} parent=11 // pred_check
          %p332 = pneg %p158
        $region22: #{tpu_custom_call.1} parent=11 // pred_check_branch
          %334 = sbr.rel (%p332) target = $region24
        $region23: #{tpu_custom_call.1} parent=11 // pred_region
          %s336 = ssub.s32 1024, 1024
          %337 = vsyncadd [#allocation10], %s336
          %s338 = sshll.u32 [#allocation11], 4
          %s339 = int_to_ptr.vmem [resolvable:$true] %s338
          %344 = dma.hbm_to_vmem [thread:$0]  %s4, 1024, %s339, [#allocation10], 64, 64, 4
        $region24: #{tpu_custom_call.1} parent=11 // pred_fallthru
          _
        // Predicated region
        $region25: #{tpu_custom_call.1} parent=11 // pred_check
          %p345 = pneg %p179
        $region26: #{tpu_custom_call.1} parent=11 // pred_check_branch
          %347 = sbr.rel (%p345) target = $region28
        $region27: #{tpu_custom_call.1} parent=11 // pred_region
          %s349 = ssub.s32 64, 64
          %350 = vsyncadd [#allocation13], %s349
          %s351 = sshll.u32 [#allocation12], 4
          %s352 = int_to_ptr.vmem [resolvable:$true] %s351
          %357 = dma.hbm_to_vmem [thread:$0]  %s5, 64, %s352, [#allocation13], 16, 16, 1
        $region28: #{tpu_custom_call.1} parent=11 // pred_fallthru
          _
        // Predicated region
        $region29: #{tpu_custom_call.1} parent=11 // pred_check
          %p358 = pneg %p200
        $region30: #{tpu_custom_call.1} parent=11 // pred_check_branch
          %360 = sbr.rel (%p358) target = $region32
        $region31: #{tpu_custom_call.1} parent=11 // pred_region
          %s362 = ssub.s32 64, 64
          %363 = vsyncadd [#allocation13], %s362
          %s364 = sshll.u32 [#allocation14], 4
          %s365 = int_to_ptr.vmem [resolvable:$true] %s364
          %370 = dma.hbm_to_vmem [thread:$0]  %s6, 64, %s365, [#allocation13], 16, 16, 1
        $region32: #{tpu_custom_call.1} parent=11 // pred_fallthru
          _
        // Predicated region
        $region33: #{tpu_custom_call.1} parent=11 // pred_check
          %p371 = pneg %p221
        $region34: #{tpu_custom_call.1} parent=11 // pred_check_branch
          %373 = sbr.rel (%p371) target = $region36
        $region35: #{tpu_custom_call.1} parent=11 // pred_region
          %s375 = ssub.s32 64, 64
          %376 = vsyncadd [#allocation16], %s375
          %s377 = sshll.u32 [#allocation15], 4
          %s378 = int_to_ptr.vmem [resolvable:$true] %s377
          %383 = dma.hbm_to_vmem [thread:$0]  %s7, 64, %s378, [#allocation16], 16, 16, 1
        $region36: #{tpu_custom_call.1} parent=11 // pred_fallthru
          _
        // Predicated region
        $region37: #{tpu_custom_call.1} parent=11 // pred_check
          %p384 = pneg %p242
        $region38: #{tpu_custom_call.1} parent=11 // pred_check_branch
          %386 = sbr.rel (%p384) target = $region40
        $region39: #{tpu_custom_call.1} parent=11 // pred_region
          %s388 = ssub.s32 256, 256
          %389 = vsyncadd [#allocation16], %s388
          %s390 = sshll.u32 [#allocation17], 4
          %s391 = int_to_ptr.vmem [resolvable:$true] %s390
          %396 = dma.hbm_to_vmem [thread:$0]  %s8, 256, %s391, [#allocation16], 64, 64, 4
        $region40: #{tpu_custom_call.1} parent=11 // pred_fallthru
          _
        // Predicated region
        $region41: #{tpu_custom_call.1} parent=11 // pred_check
          %p397 = pneg %p263
        $region42: #{tpu_custom_call.1} parent=11 // pred_check_branch
          %399 = sbr.rel (%p397) target = $region44
        $region43: #{tpu_custom_call.1} parent=11 // pred_region
          %s401 = ssub.s32 16, 16
          %402 = vsyncadd [#allocation19], %s401
          %s404 = sshll.u32 [#allocation18], 4
          %s405 = int_to_ptr.vmem [resolvable:$true] %s404
          %407 = dma.hbm_to_vmem [thread:$0]  %s9, 16, %s405, [#allocation19]
        $region44: #{tpu_custom_call.1} parent=11 // pred_fallthru
          _
      $region12: #{tpu_custom_call.1} parent=5 // pred_fallthru
        _
      %p408 = scmp.lt.s32.totalorder %s29, 2
      // Predicated region
      $region45: #{tpu_custom_call.1} parent=5 // pred_check
        %p409 = pneg %p408
      $region46: #{tpu_custom_call.1} parent=5 // pred_check_branch
        %411 = sbr.rel (%p409) target = $region48
      $region47: #{tpu_custom_call.1} parent=5 // pred_region
        // Predicated region
        $region49: #{tpu_custom_call.1} parent=47 // pred_check
          %p412 = pneg %p63
        $region50: #{tpu_custom_call.1} parent=47 // pred_check_branch
          %414 = sbr.rel (%p412) target = $region52
        $region51: #{tpu_custom_call.1} parent=47 // pred_region
          %s415 = sand.u32 %s53, 1
          %s416 = scalar_lea.sflag [#allocation4], %s415
          %s417 = sand.u32 %s53, 1
          %s418 = smul.addr %s417, 4
          %s419 = scalar_lea.vmem [#allocation3], %s418
          %s421 = ssub.s32 64, 64
          %422 = vsyncadd %s416, %s421
          %s423 = sadd.s32 %s37, %s36
          %s424 = smul.addr %s423, 64
          %s425 = scalar_lea.hbm %s0, %s424
          %s427 = sshll.u32 %s419, 4
          %s428 = int_to_ptr.vmem [resolvable:$true] %s427
          %430 = dma.hbm_to_vmem [thread:$0]  %s425, 64, %s428, %s416
        $region52: #{tpu_custom_call.1} parent=47 // pred_fallthru
          _
        // Predicated region
        $region53: #{tpu_custom_call.1} parent=47 // pred_check
          %p431 = pneg %p89
        $region54: #{tpu_custom_call.1} parent=47 // pred_check_branch
          %433 = sbr.rel (%p431) target = $region56
        $region55: #{tpu_custom_call.1} parent=47 // pred_region
          %s434 = sand.u32 %s29, 1
          %s435 = scalar_lea.sflag [#allocation7], %s434
          %s436 = sand.u32 %s79, 1
          %s437 = smul.addr %s436, 4
          %s438 = scalar_lea.vmem [#allocation6], %s437
          %s440 = ssub.s32 64, 64
          %441 = vsyncadd %s435, %s440
          %s442 = smul.addr %s36, 64
          %s443 = scalar_lea.hbm %s1, %s442
          %s445 = sshll.u32 %s438, 4
          %s446 = int_to_ptr.vmem [resolvable:$true] %s445
          %448 = dma.hbm_to_vmem [thread:$0]  %s443, 64, %s446, %s435
        $region56: #{tpu_custom_call.1} parent=47 // pred_fallthru
          _
      $region48: #{tpu_custom_call.1} parent=5 // pred_fallthru
        _
      %p449 = scmp.le.s32.totalorder 1, %s29
      %p450 = scmp.lt.s32.totalorder %s29, 3
      %p451 = pnand %p449, %p450
      %p452 = pneg %p451
      // Predicated region
      $region57: #{tpu_custom_call.1} parent=5 // pred_check
        _
      $region58: #{tpu_custom_call.1} parent=5 // pred_check_branch
        %454 = sbr.rel (%p451) target = $region60
      $region59: #{tpu_custom_call.1} parent=5 // pred_region
        %s455 = ssub.s32 %s29, 1
        %s456 = sand.u32 %s56, 1
        %s457 = scalar_lea.sflag [#allocation4], %s456
        %s458 = sand.u32 %s56, 1
        %s459 = smul.addr %s458, 4
        %s460 = scalar_lea.vmem [#allocation3], %s459
        // Predicated region
        $region61: #{tpu_custom_call.1} parent=59 // pred_check
          %p461 = pneg %p69
        $region62: #{tpu_custom_call.1} parent=59 // pred_check_branch
          %463 = sbr.rel (%p461) target = $region64
        $region63: #{tpu_custom_call.1} parent=59 // pred_region
          %464 = dma.done %s457, 64
        $region64: #{tpu_custom_call.1} parent=59 // pred_fallthru
          _
        %s465 = sand.u32 %s34, 1
        %s466 = scalar_lea.sflag [#allocation7], %s465
        %s467 = sand.u32 %s82, 1
        %s468 = smul.addr %s467, 4
        %s469 = scalar_lea.vmem [#allocation6], %s468
        // Predicated region
        $region65: #{tpu_custom_call.1} parent=59 // pred_check
          %p470 = pneg %p95
        $region66: #{tpu_custom_call.1} parent=59 // pred_check_branch
          %472 = sbr.rel (%p470) target = $region68
        $region67: #{tpu_custom_call.1} parent=59 // pred_region
          %473 = dma.done %s466, 64
        $region68: #{tpu_custom_call.1} parent=59 // pred_fallthru
          _
        // Predicated region
        $region69: #{tpu_custom_call.1} parent=59 // pred_check
          %p474 = pneg %p116
        $region70: #{tpu_custom_call.1} parent=59 // pred_check_branch
          %476 = sbr.rel (%p474) target = $region72
        $region71: #{tpu_custom_call.1} parent=59 // pred_region
          %477 = dma.done [#allocation7], 1024
        $region72: #{tpu_custom_call.1} parent=59 // pred_fallthru
          _
        // Predicated region
        $region73: #{tpu_custom_call.1} parent=59 // pred_check
          %p478 = pneg %p137
        $region74: #{tpu_custom_call.1} parent=59 // pred_check_branch
          %480 = sbr.rel (%p478) target = $region76
        $region75: #{tpu_custom_call.1} parent=59 // pred_region
          %481 = dma.done [#allocation10], 1024
        $region76: #{tpu_custom_call.1} parent=59 // pred_fallthru
          _
        // Predicated region
        $region77: #{tpu_custom_call.1} parent=59 // pred_check
          %p482 = pneg %p158
        $region78: #{tpu_custom_call.1} parent=59 // pred_check_branch
          %484 = sbr.rel (%p482) target = $region80
        $region79: #{tpu_custom_call.1} parent=59 // pred_region
          %485 = dma.done [#allocation10], 1024
        $region80: #{tpu_custom_call.1} parent=59 // pred_fallthru
          _
        // Predicated region
        $region81: #{tpu_custom_call.1} parent=59 // pred_check
          %p486 = pneg %p179
        $region82: #{tpu_custom_call.1} parent=59 // pred_check_branch
          %488 = sbr.rel (%p486) target = $region84
        $region83: #{tpu_custom_call.1} parent=59 // pred_region
          %489 = dma.done [#allocation13], 64
        $region84: #{tpu_custom_call.1} parent=59 // pred_fallthru
          _
        // Predicated region
        $region85: #{tpu_custom_call.1} parent=59 // pred_check
          %p490 = pneg %p200
        $region86: #{tpu_custom_call.1} parent=59 // pred_check_branch
          %492 = sbr.rel (%p490) target = $region88
        $region87: #{tpu_custom_call.1} parent=59 // pred_region
          %493 = dma.done [#allocation13], 64
        $region88: #{tpu_custom_call.1} parent=59 // pred_fallthru
          _
        // Predicated region
        $region89: #{tpu_custom_call.1} parent=59 // pred_check
          %p494 = pneg %p221
        $region90: #{tpu_custom_call.1} parent=59 // pred_check_branch
          %496 = sbr.rel (%p494) target = $region92
        $region91: #{tpu_custom_call.1} parent=59 // pred_region
          %497 = dma.done [#allocation16], 64
        $region92: #{tpu_custom_call.1} parent=59 // pred_fallthru
          _
        // Predicated region
        $region93: #{tpu_custom_call.1} parent=59 // pred_check
          %p498 = pneg %p242
        $region94: #{tpu_custom_call.1} parent=59 // pred_check_branch
          %500 = sbr.rel (%p498) target = $region96
        $region95: #{tpu_custom_call.1} parent=59 // pred_region
          %501 = dma.done [#allocation16], 256
        $region96: #{tpu_custom_call.1} parent=59 // pred_fallthru
          _
        // Predicated region
        $region97: #{tpu_custom_call.1} parent=59 // pred_check
          %p502 = pneg %p263
        $region98: #{tpu_custom_call.1} parent=59 // pred_check_branch
          %504 = sbr.rel (%p502) target = $region100
        $region99: #{tpu_custom_call.1} parent=59 // pred_region
          %505 = dma.done [#allocation19], 16
        $region100: #{tpu_custom_call.1} parent=59 // pred_fallthru
          _
        %s506 = sand.u32 %s56, 1
        %s507 = scalar_lea.sflag [#allocation4], %s506
        %s508 = sand.u32 %s56, 1
        %s509 = smul.addr %s508, 4
        %s510 = scalar_lea.vmem [#allocation3], %s509
        %p511 = pneg %p69
        %p512 = pneg %p66
        %s513 = sand.u32 %s34, 1
        %s514 = scalar_lea.sflag [#allocation7], %s513
        %s515 = sand.u32 %s82, 1
        %s516 = smul.addr %s515, 4
        %s517 = scalar_lea.vmem [#allocation6], %s516
        %p518 = pneg %p95
        %p519 = pneg %p92
        %p520 = pneg %p116
        %p521 = pneg %p113
        %p522 = pneg %p137
        %p523 = pneg %p134
        %p524 = pneg %p158
        %p525 = pneg %p155
        %p526 = pneg %p179
        %p527 = pneg %p176
        %p528 = pneg %p200
        %p529 = pneg %p197
        %p530 = pneg %p221
        %p531 = pneg %p218
        %p532 = pneg %p242
        %p533 = pneg %p239
        %p534 = pneg %p263
        %p535 = pneg %p260
        %p536 = pneg %p291
        %p537 = pneg %p288
        %s538 = sand.u32 %s278, 1
        %s539 = scalar_lea.sflag [#allocation5], %s538
        %s540 = sand.u32 %s278, 1
        %s541 = smul.addr %s540, 8
        %s542 = scalar_lea.vmem [#allocation20], %s541
        %v544 = vld [vmem:[%s460] sm:$0xf]
        %v545 = vld [vmem:[%s469] sm:$0xf]
        %vm546 = vcmask 261120
        %547 = vst.msk [vmem:[#allocation2] sm:$0xff] %vm546, 0.0
        loop: start=0, step=1, limit=4
        $region101: #{tpu_custom_call.1} parent=59 // loop_pre_header
          _
        $region102: #{tpu_custom_call.1} parent=59 // loop_header
          %s549 = sphi 0, %s553
          %p550 = scmp.ge.s32.totalorder %s549, 4
        $region103: #{tpu_custom_call.1} parent=59 // loop_header_branch
          %552 = sbr.rel (%p550) target = $region107
        $region104: #{tpu_custom_call.1} parent=59 // loop_body
          %s554 = smul.u32 %s549, 4
          %s555 = smul.addr %s554, 4
          %s556 = scalar_lea.vmem [#allocation8], %s555
          %v557 = vld [vmem:[%s556] sm:$0xf]
          %v558 = vld [vmem:[%s556 + $0x4] sm:$0xf]
          %v559 = vld [vmem:[%s556 + $0x8] sm:$0xf]
          %v560 = vld [vmem:[%s556 + $0xc] sm:$0xf]
          %s561 = smul.addr %s554, 4
          %s562 = scalar_lea.vmem [#allocation9], %s561
          %v563 = vld [vmem:[%s562] sm:$0xf]
          %v564 = vld [vmem:[%s562 + $0x4] sm:$0xf]
          %v565 = vld [vmem:[%s562 + $0x8] sm:$0xf]
          %v566 = vld [vmem:[%s562 + $0xc] sm:$0xf]
          %s567 = smul.addr %s554, 4
          %s568 = scalar_lea.vmem [#allocation11], %s567
          %v569 = vld [vmem:[%s568] sm:$0xf]
          %v570 = vld [vmem:[%s568 + $0x4] sm:$0xf]
          %v571 = vld [vmem:[%s568 + $0x8] sm:$0xf]
          %v572 = vld [vmem:[%s568 + $0xc] sm:$0xf]
          %s573 = scalar_lea.vmem [#allocation12], %s549
          %v574 = vld [vmem:[%s573] sm:$0x1]
          %v576 = vlaneseq
          %v577 = vshrl.u32 %v576, 7
          %v578 = vsub.s32 0, %v577
          %v579 = vrot.slane %v574, %v578
          %v585 = vunpack.c.l.b16 %v557
          %v586 = vunpack.c.l.b16 %v558
          %v587 = vunpack.c.l.b16 %v559
          %v588 = vunpack.c.l.b16 %v560
          %v589 = vpack.c.b16 %v586, %v585
          %v590 = vpack.c.b16 %v588, %v587
          %v594 = vsel %vm546, %v544, 0
          %596 = vmatprep.subr.bf16.mxu0 0
          %597 = vmatpush1.bf16.msra.mxu0 %v589
          %598 = vmatprep.subr.bf16.mxu0 0
          %599 = vmatpush1.bf16.msra.mxu0 %v590
          %600 = vmatprep.subr.bf16.mxu0 0
          %601 = vmatpush1.bf16.msra.mxu0 0
          %602 = vmatprep.subr.bf16.mxu0 0
          %603 = vmatpush1.bf16.msra.mxu0 0
          %604 = vmatprep.subr.bf16.mxu0 0
          %605 = vmatpush1.bf16.msra.mxu0 0
          %606 = vmatprep.subr.bf16.mxu0 0
          %607 = vmatpush1.bf16.msra.mxu0 0
          %608 = vmatprep.subr.bf16.mxu0 0
          %609 = vmatpush1.bf16.msra.mxu0 0
          %610 = vmatprep.subr.bf16.mxu0 0
          %611 = vmatpush1.bf16.msra.mxu0 0
          %612 = vmatprep.subr.bf16.mxu0 0
          %613 = vmatpush1.bf16.msra.mxu0 0
          %614 = vmatprep.subr.bf16.mxu0 0
          %615 = vmatpush1.bf16.msra.mxu0 0
          %616 = vmatprep.subr.bf16.mxu0 0
          %617 = vmatpush1.bf16.msra.mxu0 0
          %618 = vmatprep.subr.bf16.mxu0 0
          %619 = vmatpush1.bf16.msra.mxu0 0
          %620 = vmatprep.subr.bf16.mxu0 0
          %621 = vmatpush1.bf16.msra.mxu0 0
          %622 = vmatprep.subr.bf16.mxu0 0
          %623 = vmatpush1.bf16.msra.mxu0 0
          %624 = vmatprep.subr.bf16.mxu0 0
          %625 = vmatpush1.bf16.msra.mxu0 0
          %626 = vmatprep.subr.bf16.mxu0 0
          %627 = vmatpush1.bf16.msra.mxu0 0
          %628 = vmatprep.mubr.bf16.mxu0 0
          %629 = vmatmul.mubr.bf16.gmra.mrb[0].mxu0 %v594
          %v630 = vpop.f32.mrb[0].mxu0
          %v631 = vadd.f32 %v579, %v630
          %v632 = vpop.f32.mrb[0].mxu0
          %v633 = vpop.f32.mrb[0].mxu0
          %v634 = vpop.f32.mrb[0].mxu0
          %635 = vdwg.mxu0
          %v636 = vmul.f32 %v631, 0.35355338
          %s637 = scalar_lea.vmem [#allocation14], %s549
          %v638 = vld [vmem:[%s637] sm:$0x1]
          %v640 = vlaneseq
          %v641 = vshrl.u32 %v640, 7
          %v642 = vsub.s32 0, %v641
          %v643 = vrot.slane %v638, %v642
          %v649 = vunpack.c.l.b16 %v563
          %v650 = vunpack.c.l.b16 %v564
          %v651 = vunpack.c.l.b16 %v565
          %v652 = vunpack.c.l.b16 %v566
          %v653 = vpack.c.b16 %v650, %v649
          %v654 = vpack.c.b16 %v652, %v651
          %v658 = vsel %vm546, %v545, 0
          %660 = vmatprep.subr.bf16.mxu0 0
          %661 = vmatpush1.bf16.msra.mxu0 %v653
          %662 = vmatprep.subr.bf16.mxu0 0
          %663 = vmatpush1.bf16.msra.mxu0 %v654
          %664 = vmatprep.subr.bf16.mxu0 0
          %665 = vmatpush1.bf16.msra.mxu0 0
          %666 = vmatprep.subr.bf16.mxu0 0
          %667 = vmatpush1.bf16.msra.mxu0 0
          %668 = vmatprep.subr.bf16.mxu0 0
          %669 = vmatpush1.bf16.msra.mxu0 0
          %670 = vmatprep.subr.bf16.mxu0 0
          %671 = vmatpush1.bf16.msra.mxu0 0
          %672 = vmatprep.subr.bf16.mxu0 0
          %673 = vmatpush1.bf16.msra.mxu0 0
          %674 = vmatprep.subr.bf16.mxu0 0
          %675 = vmatpush1.bf16.msra.mxu0 0
          %676 = vmatprep.subr.bf16.mxu0 0
          %677 = vmatpush1.bf16.msra.mxu0 0
          %678 = vmatprep.subr.bf16.mxu0 0
          %679 = vmatpush1.bf16.msra.mxu0 0
          %680 = vmatprep.subr.bf16.mxu0 0
          %681 = vmatpush1.bf16.msra.mxu0 0
          %682 = vmatprep.subr.bf16.mxu0 0
          %683 = vmatpush1.bf16.msra.mxu0 0
          %684 = vmatprep.subr.bf16.mxu0 0
          %685 = vmatpush1.bf16.msra.mxu0 0
          %686 = vmatprep.subr.bf16.mxu0 0
          %687 = vmatpush1.bf16.msra.mxu0 0
          %688 = vmatprep.subr.bf16.mxu0 0
          %689 = vmatpush1.bf16.msra.mxu0 0
          %690 = vmatprep.subr.bf16.mxu0 0
          %691 = vmatpush1.bf16.msra.mxu0 0
          %692 = vmatprep.mubr.bf16.mxu0 0
          %693 = vmatmul.mubr.bf16.gmra.mrb[0].mxu0 %v658
          %v694 = vpop.f32.mrb[0].mxu0
          %v695 = vadd.f32 %v643, %v694
          %v696 = vpop.f32.mrb[0].mxu0
          %v697 = vpop.f32.mrb[0].mxu0
          %v698 = vpop.f32.mrb[0].mxu0
          %699 = vdwg.mxu0
          %s700 = scalar_lea.vmem [#allocation15], %s549
          %v701 = vld [vmem:[%s700] sm:$0x1]
          %v703 = vlaneseq
          %v704 = vshrl.u32 %v703, 7
          %v705 = vsub.s32 0, %v704
          %v706 = vrot.slane %v701, %v705
          %v712 = vunpack.c.l.b16 %v569
          %v713 = vunpack.c.l.b16 %v570
          %v714 = vunpack.c.l.b16 %v571
          %v715 = vunpack.c.l.b16 %v572
          %v716 = vpack.c.b16 %v713, %v712
          %v717 = vpack.c.b16 %v715, %v714
          %720 = vmatprep.subr.bf16.mxu0 0
          %721 = vmatpush1.bf16.msra.mxu0 %v716
          %722 = vmatprep.subr.bf16.mxu0 0
          %723 = vmatpush1.bf16.msra.mxu0 %v717
          %724 = vmatprep.subr.bf16.mxu0 0
          %725 = vmatpush1.bf16.msra.mxu0 0
          %726 = vmatprep.subr.bf16.mxu0 0
          %727 = vmatpush1.bf16.msra.mxu0 0
          %728 = vmatprep.subr.bf16.mxu0 0
          %729 = vmatpush1.bf16.msra.mxu0 0
          %730 = vmatprep.subr.bf16.mxu0 0
          %731 = vmatpush1.bf16.msra.mxu0 0
          %732 = vmatprep.subr.bf16.mxu0 0
          %733 = vmatpush1.bf16.msra.mxu0 0
          %734 = vmatprep.subr.bf16.mxu0 0
          %735 = vmatpush1.bf16.msra.mxu0 0
          %736 = vmatprep.subr.bf16.mxu0 0
          %737 = vmatpush1.bf16.msra.mxu0 0
          %738 = vmatprep.subr.bf16.mxu0 0
          %739 = vmatpush1.bf16.msra.mxu0 0
          %740 = vmatprep.subr.bf16.mxu0 0
          %741 = vmatpush1.bf16.msra.mxu0 0
          %742 = vmatprep.subr.bf16.mxu0 0
          %743 = vmatpush1.bf16.msra.mxu0 0
          %744 = vmatprep.subr.bf16.mxu0 0
          %745 = vmatpush1.bf16.msra.mxu0 0
          %746 = vmatprep.subr.bf16.mxu0 0
          %747 = vmatpush1.bf16.msra.mxu0 0
          %748 = vmatprep.subr.bf16.mxu0 0
          %749 = vmatpush1.bf16.msra.mxu0 0
          %750 = vmatprep.subr.bf16.mxu0 0
          %751 = vmatpush1.bf16.msra.mxu0 0
          %752 = vmatprep.mubr.bf16.mxu0 0
          %753 = vmatmul.mubr.bf16.gmra.mrb[0].mxu0 %v658
          %v754 = vpop.f32.mrb[0].mxu0
          %v755 = vadd.f32 %v706, %v754
          %v756 = vpop.f32.mrb[0].mxu0
          %v757 = vpop.f32.mrb[0].mxu0
          %v758 = vpop.f32.mrb[0].mxu0
          %759 = vdwg.mxu0
          %v760 = vpack.c.bf16 %v636, %v636
          %v761 = vpack.c.bf16 %v695, %v695
          %vm762 = vcmask 64512
          %v764 = vsel %vm762, %v760, 0
          %v767 = vsel %vm762, %v761, 0
          %769 = vmatprep.subr.bf16.mxu0 0
          %770 = vmatpush1.bf16.xpose.msra.mxu0 %v767
          %771 = vmatprep.subr.bf16.mxu0 0
          %772 = vmatpush1.bf16.xpose.msra.mxu0 0
          %773 = vmatprep.subr.bf16.mxu0 0
          %774 = vmatpush1.bf16.xpose.msra.mxu0 0
          %775 = vmatprep.subr.bf16.mxu0 0
          %776 = vmatpush1.bf16.xpose.msra.mxu0 0
          %777 = vmatprep.subr.bf16.mxu0 0
          %778 = vmatpush1.bf16.xpose.msra.mxu0 0
          %779 = vmatprep.subr.bf16.mxu0 0
          %780 = vmatpush1.bf16.xpose.msra.mxu0 0
          %781 = vmatprep.subr.bf16.mxu0 0
          %782 = vmatpush1.bf16.xpose.msra.mxu0 0
          %783 = vmatprep.subr.bf16.mxu0 0
          %784 = vmatpush1.bf16.xpose.msra.mxu0 0
          %785 = vmatprep.subr.bf16.mxu0 0
          %786 = vmatpush1.bf16.xpose.msra.mxu0 0
          %787 = vmatprep.subr.bf16.mxu0 0
          %788 = vmatpush1.bf16.xpose.msra.mxu0 0
          %789 = vmatprep.subr.bf16.mxu0 0
          %790 = vmatpush1.bf16.xpose.msra.mxu0 0
          %791 = vmatprep.subr.bf16.mxu0 0
          %792 = vmatpush1.bf16.xpose.msra.mxu0 0
          %793 = vmatprep.subr.bf16.mxu0 0
          %794 = vmatpush1.bf16.xpose.msra.mxu0 0
          %795 = vmatprep.subr.bf16.mxu0 0
          %796 = vmatpush1.bf16.xpose.msra.mxu0 0
          %797 = vmatprep.subr.bf16.mxu0 0
          %798 = vmatpush1.bf16.xpose.msra.mxu0 0
          %799 = vmatprep.subr.bf16.mxu0 0
          %800 = vmatpush1.bf16.xpose.msra.mxu0 0
          %801 = vmatprep.mubr.bf16.mxu0 0
          %802 = vmatmul.mubr.bf16.gmra.mrb[0].mxu0 %v764
          %v803 = vpop.f32.mrb[0].mxu0
          %v804 = vadd.f32 0.0, %v803
          %v805 = vpop.f32.mrb[0].mxu0
          %v806 = vpop.f32.mrb[0].mxu0
          %v807 = vpop.f32.mrb[0].mxu0
          %808 = vdwg.mxu0
          %v809 = vsel %vm762, %v804, -inf
          %810 = vmax.xlane.f32.xlu0 %v809
          %v811 = vpop.xlane.xlu0 %810
          %v812 = vsub.f32 %v804, %v811
          %v813 = vmul.f32 %v812, 1.442695
          %v814 = vpow.pop %v813
          %v815 = vsel %vm762, %v814, 0.0
          %816 = vadd.xlane.f32.xlu0 %v815
          %v817 = vpop.xlane.xlu0 %816
          %v818 = vrcp.pop %v817
          %v819 = vmul.f32 %v814, %v818
          %v820 = vpack.c.bf16 %v819, %v819
          %v821 = vpack.c.bf16 %v755, %v755
          %v823 = vsel %vm762, %v820, 0
          %vm825 = vcmask 1043456
          %v827 = vsel %vm825, %v821, 0
          %829 = vmatprep.subr.bf16.mxu0 0
          %830 = vmatpush1.bf16.msra.mxu0 %v827
          %831 = vmatprep.subr.bf16.mxu0 0
          %832 = vmatpush1.bf16.msra.mxu0 0
          %833 = vmatprep.subr.bf16.mxu0 0
          %834 = vmatpush1.bf16.msra.mxu0 0
          %835 = vmatprep.subr.bf16.mxu0 0
          %836 = vmatpush1.bf16.msra.mxu0 0
          %837 = vmatprep.subr.bf16.mxu0 0
          %838 = vmatpush1.bf16.msra.mxu0 0
          %839 = vmatprep.subr.bf16.mxu0 0
          %840 = vmatpush1.bf16.msra.mxu0 0
          %841 = vmatprep.subr.bf16.mxu0 0
          %842 = vmatpush1.bf16.msra.mxu0 0
          %843 = vmatprep.subr.bf16.mxu0 0
          %844 = vmatpush1.bf16.msra.mxu0 0
          %845 = vmatprep.subr.bf16.mxu0 0
          %846 = vmatpush1.bf16.msra.mxu0 0
          %847 = vmatprep.subr.bf16.mxu0 0
          %848 = vmatpush1.bf16.msra.mxu0 0
          %849 = vmatprep.subr.bf16.mxu0 0
          %850 = vmatpush1.bf16.msra.mxu0 0
          %851 = vmatprep.subr.bf16.mxu0 0
          %852 = vmatpush1.bf16.msra.mxu0 0
          %853 = vmatprep.subr.bf16.mxu0 0
          %854 = vmatpush1.bf16.msra.mxu0 0
          %855 = vmatprep.subr.bf16.mxu0 0
          %856 = vmatpush1.bf16.msra.mxu0 0
          %857 = vmatprep.subr.bf16.mxu0 0
          %858 = vmatpush1.bf16.msra.mxu0 0
          %859 = vmatprep.subr.bf16.mxu0 0
          %860 = vmatpush1.bf16.msra.mxu0 0
          %861 = vmatprep.mubr.bf16.mxu0 0
          %862 = vmatmul.mubr.bf16.gmra.mrb[0].mxu0 %v823
          %v863 = vpop.f32.mrb[0].mxu0
          %v864 = vadd.f32 0.0, %v863
          %v865 = vpop.f32.mrb[0].mxu0
          %v866 = vpop.f32.mrb[0].mxu0
          %v867 = vpop.f32.mrb[0].mxu0
          %868 = vdwg.mxu0
          %v869 = vld [vmem:[#allocation2] sm:$0xff]
          %v870 = vpack.c.bf16 %v864, %v864
          %s871 = smul.addr %s549, 4
          %s872 = scalar_lea.vmem [#allocation17], %s871
          %v873 = vld [vmem:[%s872] sm:$0xf]
          %v875 = vsel %vm762, %v870, 0
          %v878 = vsel %vm825, %v873, 0
          %880 = vmatprep.subr.bf16.mxu0 0
          %881 = vmatpush1.bf16.msra.mxu0 %v878
          %882 = vmatprep.subr.bf16.mxu0 0
          %883 = vmatpush1.bf16.msra.mxu0 0
          %884 = vmatprep.subr.bf16.mxu0 0
          %885 = vmatpush1.bf16.msra.mxu0 0
          %886 = vmatprep.subr.bf16.mxu0 0
          %887 = vmatpush1.bf16.msra.mxu0 0
          %888 = vmatprep.subr.bf16.mxu0 0
          %889 = vmatpush1.bf16.msra.mxu0 0
          %890 = vmatprep.subr.bf16.mxu0 0
          %891 = vmatpush1.bf16.msra.mxu0 0
          %892 = vmatprep.subr.bf16.mxu0 0
          %893 = vmatpush1.bf16.msra.mxu0 0
          %894 = vmatprep.subr.bf16.mxu0 0
          %895 = vmatpush1.bf16.msra.mxu0 0
          %896 = vmatprep.subr.bf16.mxu0 0
          %897 = vmatpush1.bf16.msra.mxu0 0
          %898 = vmatprep.subr.bf16.mxu0 0
          %899 = vmatpush1.bf16.msra.mxu0 0
          %900 = vmatprep.subr.bf16.mxu0 0
          %901 = vmatpush1.bf16.msra.mxu0 0
          %902 = vmatprep.subr.bf16.mxu0 0
          %903 = vmatpush1.bf16.msra.mxu0 0
          %904 = vmatprep.subr.bf16.mxu0 0
          %905 = vmatpush1.bf16.msra.mxu0 0
          %906 = vmatprep.subr.bf16.mxu0 0
          %907 = vmatpush1.bf16.msra.mxu0 0
          %908 = vmatprep.subr.bf16.mxu0 0
          %909 = vmatpush1.bf16.msra.mxu0 0
          %910 = vmatprep.subr.bf16.mxu0 0
          %911 = vmatpush1.bf16.msra.mxu0 0
          %912 = vmatprep.mubr.bf16.mxu0 0
          %913 = vmatmul.mubr.bf16.gmra.mrb[0].mxu0 %v875
          %v914 = vpop.f32.mrb[0].mxu0
          %v915 = vadd.f32 0.0, %v914
          %v916 = vpop.f32.mrb[0].mxu0
          %v917 = vpop.f32.mrb[0].mxu0
          %v918 = vpop.f32.mrb[0].mxu0
          %919 = vdwg.mxu0
          %v920 = vadd.f32 %v869, %v915
          %921 = vst.msk [vmem:[#allocation2] sm:$0xff] %vm546, %v920
        $region105: #{tpu_custom_call.1} parent=59 // loop_footer
          %s553 = sadd.s32 1, %s549
        $region106: #{tpu_custom_call.1} parent=59 // loop_footer_branch
          %548 = sbr.rel target = $region102
        $region107: #{tpu_custom_call.1} parent=59 // loop_exit
          _
        %v922 = vld [vmem:[#allocation2] sm:$0xff]
        %v923 = vld [vmem:[#allocation18] sm:$0x1]
        %v925 = vlaneseq
        %v926 = vshrl.u32 %v925, 7
        %v927 = vsub.s32 0, %v926
        %v928 = vrot.slane %v923, %v927
        %v930 = vadd.f32 %v922, %v928
        %931 = vst.msk [vmem:[%s542] sm:$0xff] %vm546, %v930
        %s932 = sand.u32 %s278, 1
        %s933 = scalar_lea.sflag [#allocation5], %s932
        %s934 = sand.u32 %s278, 1
        %s935 = smul.addr %s934, 8
        %s936 = scalar_lea.vmem [#allocation20], %s935
        // Predicated region
        $region108: #{tpu_custom_call.1} parent=59 // pred_check
          %p937 = pneg %p288
        $region109: #{tpu_custom_call.1} parent=59 // pred_check_branch
          %939 = sbr.rel (%p937) target = $region111
        $region110: #{tpu_custom_call.1} parent=59 // pred_region
          %s941 = ssub.s32 128, 128
          %942 = vsyncadd %s933, %s941
          %s943 = sadd.s32 %s39, %s38
          %s944 = smul.addr %s943, 128
          %s945 = scalar_lea.hbm %s10, %s944
          %s947 = sshll.u32 %s936, 4
          %s948 = int_to_ptr.vmem [resolvable:$true] %s947
          %950 = dma.vmem_to_hbm [thread:$0]  %s948, 128, %s945, %s933
        $region111: #{tpu_custom_call.1} parent=59 // pred_fallthru
          _
      $region60: #{tpu_custom_call.1} parent=5 // pred_fallthru
        _
      %p951 = scmp.le.s32.totalorder 2, %s29
      // Predicated region
      $region112: #{tpu_custom_call.1} parent=5 // pred_check
        %p952 = pneg %p951
      $region113: #{tpu_custom_call.1} parent=5 // pred_check_branch
        %954 = sbr.rel (%p952) target = $region115
      $region114: #{tpu_custom_call.1} parent=5 // pred_region
        %s955 = ssub.s32 %s29, 2
        // Predicated region
        $region116: #{tpu_custom_call.1} parent=114 // pred_check
          %p956 = pneg %p294
        $region117: #{tpu_custom_call.1} parent=114 // pred_check_branch
          %958 = sbr.rel (%p956) target = $region119
        $region118: #{tpu_custom_call.1} parent=114 // pred_region
          %s959 = sand.u32 %s279, 1
          %s960 = scalar_lea.sflag [#allocation5], %s959
          %s961 = sand.u32 %s279, 1
          %s962 = smul.addr %s961, 8
          %s963 = scalar_lea.vmem [#allocation20], %s962
          %964 = dma.done %s960, 128
        $region119: #{tpu_custom_call.1} parent=114 // pred_fallthru
          _
      $region115: #{tpu_custom_call.1} parent=5 // pred_fallthru
        _
    $region6: #{tpu_custom_call.1} parent=1 // loop_footer
      %s33 = sadd.s32 1, %s29
    $region7: #{tpu_custom_call.1} parent=1 // loop_footer_branch
      %28 = sbr.rel target = $region3
    $region8: #{tpu_custom_call.1} parent=1 // loop_exit
      _
    %965 = vsyncpa [#allocation4], 1
    %s966 = scalar_lea.sflag [#allocation4], 1
    %967 = vsyncpa %s966, 1
    %968 = vsyncpa [#allocation7], 1
    %s969 = scalar_lea.sflag [#allocation7], 1
    %970 = vsyncpa %s969, 1
    %971 = vsyncpa [#allocation10], 1
    %972 = vsyncpa [#allocation13], 1
    %973 = vsyncpa [#allocation16], 1
    %974 = vsyncpa [#allocation19], 1
    %975 = vsyncpa [#allocation5], 1
    %s976 = scalar_lea.sflag [#allocation5], 1
    %977 = vsyncpa %s976, 1

</llo_original>
